<compile_context>
chip_gen: v7x
topology: tpu7x:2x2x1
jax: 0.10.0
libtpu: 0.0.40
codegen_flags: <defaults>
</compile_context>

<pallas_src>
import jax
import jax.numpy as jnp
import numpy as np
from jax.experimental import pallas as pl
from jax.experimental.pallas import tpu as pltpu

PATCH = 16
C_IN = 1
C_OUT = 192
K = C_IN * PATCH * PATCH  # 256


def _proj_matmul_kernel(x_ref, w_ref, b_ref, o_ref):
    # x_ref: (TN, K) bf16 patch rows, w_ref: (K, C_OUT) bf16, b_ref: (1, C_OUT) f32
    acc = jnp.dot(x_ref[...], w_ref[...], preferred_element_type=jnp.float32)
    o_ref[...] = (acc + b_ref[...]).astype(o_ref.dtype)   # f32 math, bf16 store


def _round_up(x, m):
    return ((x + m - 1) // m) * m


def _cdiv(a, b):
    return (a + b - 1) // b


def _row_tile_cap():
    """Per-generation row-tile cap (review: 2048 on v7x, 1024 on v5e/v6e)."""
    try:
        kind = jax.devices()[0].device_kind.lower()
    except Exception:
        kind = ""
    return 2048 if "v7" in kind else 1024


def _choose_row_tile(n, cap):
    """Row tile for the bf16 patch matrix.

    - n <= 256: one full-extent block (always a legal block shape, no padding,
      and per-step overhead would dominate any pipelining win at this size).
    - otherwise: aim for >= 4 grid steps (>= 2 per v7x TensorCore on the
      "parallel" axis) with a multiple-of-16 tile, capped per generation.
    """
    n = max(n, 1)
    if n <= 256:
        return n
    tn = _round_up(_cdiv(n, 4), 16)
    return max(16, min(tn, cap))


def proj_matmul_pallas(patches, w_mat, bias):
    """patches: (N, K) bf16, w_mat: (K, C_OUT) bf16, bias: (1, C_OUT) f32 -> (N, C_OUT) bf16."""
    N, Kd = patches.shape
    Co = w_mat.shape[1]
    TN = _choose_row_tile(N, _row_tile_cap())
    grid = (pl.cdiv(N, TN),)  # partial last block handled by Pallas masking: no pad, no out[:N]
    out = pl.pallas_call(
        _proj_matmul_kernel,
        out_shape=jax.ShapeDtypeStruct((N, Co), jnp.bfloat16),
        grid=grid,
        in_specs=[
            pl.BlockSpec((TN, Kd), lambda i: (i, 0)),   # patch rows, tiled over the grid
            pl.BlockSpec((Kd, Co), lambda i: (0, 0)),   # full weight, resident (96 KiB)
            pl.BlockSpec((1, Co), lambda i: (0, 0)),    # bias, resident
        ],
        out_specs=pl.BlockSpec((TN, Co), lambda i: (i, 0)),
        compiler_params=pltpu.CompilerParams(
            dimension_semantics=("parallel",)
        ),
    )(patches, w_mat, bias)
    return out


def proj_layer_forward(x, conv_w, conv_b):
    """x: (B, 1, H, W) NCHW, conv_w: (192, 1, 16, 16), conv_b: (192,).

    Returns (B, Wp*Hp, 192) in bf16 (f32-accumulated); row order is (wp, hp),
    matching the PyTorch module's transpose(1,3) + rearrange.
    """
    B, Cin, H, W = x.shape
    assert Cin == C_IN and H % PATCH == 0 and W % PATCH == 0
    Hp, Wp = H // PATCH, W // PATCH

    # im2col with rows in (b, wp, hp) order so the kernel writes the module's
    # final Wp-major layout directly (folds transpose(1,3) + rearrange into the
    # output placement; no post-kernel transpose pass). Each patch is flattened
    # (cin, ph, pw) to match conv_w[co, cin, ph, pw]. Runs as one XLA
    # transpose+convert fusion (see TODO at top about fusing it into the kernel).
    xp = x.reshape(B, Cin, Hp, PATCH, Wp, PATCH)
    xp = xp.transpose(0, 4, 2, 1, 3, 5)                       # (B, Wp, Hp, Cin, 16, 16)
    patches = xp.reshape(B * Wp * Hp, K).astype(jnp.bfloat16)

    w_mat = conv_w.reshape(C_OUT, K).T.astype(jnp.bfloat16)    # (K, 192)
    bias = conv_b.reshape(1, C_OUT).astype(jnp.float32)

    y = proj_matmul_pallas(patches, w_mat, bias)               # (B*Wp*Hp, 192) bf16
    return y.reshape(B, Wp * Hp, C_OUT)


def reference_forward(x, conv_w, conv_b):
    """Pure-JAX f32 reference matching the PyTorch module exactly."""
    out = jax.lax.conv_general_dilated(
        x, conv_w, window_strides=(PATCH, PATCH), padding="VALID",
        dimension_numbers=("NCHW", "OIHW", "NCHW"))
    out = out + conv_b.reshape(1, C_OUT, 1, 1)
    out = jnp.transpose(out, (0, 3, 2, 1))                     # transpose(1,3)
    # squeeze(2) is a no-op here; rearrange 'b c h w -> b (c h) w'
    B, Wp, Hp, Co = out.shape
    return out.reshape(B, Wp * Hp, Co)


if __name__ == "__main__":
    key = jax.random.PRNGKey(0)
    k_x, k_w, k_b = jax.random.split(key, 3)

    # Small input consistent with Conv2d(1, 192, k=16, s=16): (B=2, C=1, 64, 64)
    x = jax.random.normal(k_x, (2, 1, 64, 64), dtype=jnp.float32)
    conv_w = jax.random.normal(k_w, (C_OUT, C_IN, PATCH, PATCH), dtype=jnp.float32) * 0.02
    conv_b = jax.random.normal(k_b, (C_OUT,), dtype=jnp.float32) * 0.02

    out = proj_layer_forward(x, conv_w, conv_b)
    out = jax.block_until_ready(out)

    ref = jax.block_until_ready(reference_forward(x, conv_w, conv_b))
    assert out.shape == ref.shape == (2, 16, C_OUT), out.shape
    np.testing.assert_allclose(
        np.asarray(out).astype(np.float32), np.asarray(ref),
        rtol=2e-2, atol=2e-2)

    print("KERNEL_OK")
</pallas_src>

<mosaic_0001>
module attributes {stable_mosaic.version = 11 : i64} {
  func.func @_proj_matmul_kernel(%arg0: i32, %arg1: memref<32x256xbf16, #tpu.memory_space<vmem>>, %arg2: memref<256x192xbf16, #tpu.memory_space<vmem>>, %arg3: memref<1x192xf32, #tpu.memory_space<vmem>>, %arg4: memref<32x192xbf16, #tpu.memory_space<vmem>>) attributes {dimension_semantics = [#tpu.dimension_semantics<parallel>], iteration_bounds = array<i64: 1>, scalar_prefetch = 0 : i64, scratch_operands = 0 : i64, tpu.core_type = #tpu.core_type<tc>, window_params = [{transform_indices = @transform_0, window_bounds = array<i64: 32, 256>}, {pipeline_mode = #tpu.pipeline_mode<synchronous>, transform_indices = @transform_1, window_bounds = array<i64: 256, 192>}, {pipeline_mode = #tpu.pipeline_mode<synchronous>, transform_indices = @transform_2, window_bounds = array<i64: 1, 192>}, {transform_indices = @transform_3, window_bounds = array<i64: 32, 192>}]} {
    %c0 = arith.constant 0 : index
    %c0_0 = arith.constant 0 : index
    %0 = vector.load %arg1[%c0, %c0_0] : memref<32x256xbf16, #tpu.memory_space<vmem>>, vector<32x256xbf16>
    %c0_1 = arith.constant 0 : index
    %c0_2 = arith.constant 0 : index
    %1 = vector.load %arg2[%c0_1, %c0_2] : memref<256x192xbf16, #tpu.memory_space<vmem>>, vector<256x192xbf16>
    %cst = arith.constant dense<0.000000e+00> : vector<32x192xf32>
    %2 = tpu.matmul %0, %1, %cst {dimension_numbers = #tpu.dot_dimension_numbers<[1], [0], [0], [1], [0, 0, 1, 1], [], []>} : vector<32x256xbf16>, vector<256x192xbf16>, vector<32x192xf32> -> vector<32x192xf32>
    %c0_3 = arith.constant 0 : index
    %c0_4 = arith.constant 0 : index
    %3 = vector.load %arg3[%c0_3, %c0_4] : memref<1x192xf32, #tpu.memory_space<vmem>>, vector<1x192xf32>
    %4 = vector.broadcast %3 : vector<1x192xf32> to vector<32x192xf32>
    %5 = arith.addf %2, %4 : vector<32x192xf32>
    %6 = arith.truncf %5 : vector<32x192xf32> to vector<32x192xbf16>
    %c0_5 = arith.constant 0 : index
    %c0_6 = arith.constant 0 : index
    %7 = vector.load %arg4[%c0_5, %c0_6] : memref<32x192xbf16, #tpu.memory_space<vmem>>, vector<32x192xbf16>
    tpu.vector_store %arg4[%c0_5, %c0_6], %6 {strides = array<i32>} : memref<32x192xbf16, #tpu.memory_space<vmem>>, vector<32x192xbf16>,
    return
  }
  func.func @transform_0(%arg0: i32) -> (i32, i32) {
    %c0_i32 = arith.constant 0 : i32
    %c0_i32_0 = arith.constant 0 : i32
    return %arg0, %c0_i32 : i32, i32
  }
  func.func @transform_1(%arg0: i32) -> (i32, i32) {
    %c0_i32 = arith.constant 0 : i32
    %c0_i32_0 = arith.constant 0 : i32
    %c0_i32_1 = arith.constant 0 : i32
    return %c0_i32, %c0_i32_0 : i32, i32
  }
  func.func @transform_2(%arg0: i32) -> (i32, i32) {
    %c0_i32 = arith.constant 0 : i32
    %c0_i32_0 = arith.constant 0 : i32
    %c0_i32_1 = arith.constant 0 : i32
    return %c0_i32, %c0_i32_0 : i32, i32
  }
  func.func @transform_3(%arg0: i32) -> (i32, i32) {
    %c0_i32 = arith.constant 0 : i32
    %c0_i32_0 = arith.constant 0 : i32
    return %arg0, %c0_i32 : i32, i32
  }
}

</mosaic_0001>

<llo_original>
// kernel: tpu_custom_call.1
$region0: #{tpu_custom_call.1}
  #allocation0 [shape = 'u32[]', space=smem, size = 0x4, offset = 0x4, fixed_abs, tag = 'smem constant byte address 0x4 - core index']
  #allocation1 [shape = 'u32[144,128]{1,0:T(1,128)}', space=vmem, size = 0x12000, scoped, tag = 'internal scratch']
  %s0 = inlined_call_operand.vmem [shape: bf16[32,256], index: 0, kind: input, shape index: {}]
  %s1 = inlined_call_operand.vmem [shape: bf16[256,192], index: 1, kind: input, shape index: {}]
  %s2 = inlined_call_operand.vmem [shape: f32[1,192], index: 2, kind: input, shape index: {}]
  %s3 = inlined_call_operand.hbm [shape: bf16[32,192], index: 3, kind: output, shape index: {}]
  %s4 = sld [smem:[#allocation0]]
  $region22: #{tpu_custom_call.1} parent=0
    _
  %s6 = ssub.s32 1, %s4
  %s7 = scalar_select 0, %s6, %s4
  $region1: #{tpu_custom_call.1} parent=0
    #allocation2 [shape = 'u8[16384]{0}', space=vmem, size = 0x4000, scoped, tag = 'output window, operand 0, single buffered']
    #allocation3 [shape = 's32[1]{0}', space=sflag, size = 0x4, scoped, tag = 'scoped memory for tpu_custom_call.1']
    %8 = vsyncpa [#allocation3], 0
    // Predicated region
    $region2: #{tpu_custom_call.1} parent=1 // pred_check
      _
    $region3: #{tpu_custom_call.1} parent=1 // pred_check_branch
      %10 = sbr.rel (0) target = $region5
    $region4: #{tpu_custom_call.1} parent=1 // pred_region
      _
    $region5: #{tpu_custom_call.1} parent=1 // pred_fallthru
      _
    // Predicated region
    $region6: #{tpu_custom_call.1} parent=1 // pred_check
      _
    $region7: #{tpu_custom_call.1} parent=1 // pred_check_branch
      %12 = sbr.rel (0) target = $region9
    $region8: #{tpu_custom_call.1} parent=1 // pred_region
      _
    $region9: #{tpu_custom_call.1} parent=1 // pred_fallthru
      _
    // Predicated region
    $region10: #{tpu_custom_call.1} parent=1 // pred_check
      _
    $region11: #{tpu_custom_call.1} parent=1 // pred_check_branch
      %14 = sbr.rel (0) target = $region13
    $region12: #{tpu_custom_call.1} parent=1 // pred_region
      _
    $region13: #{tpu_custom_call.1} parent=1 // pred_fallthru
      _
    %v15 = vld [vmem:[%s0] sm:$0xff]
    %v16 = vld [vmem:[%s0 + $0x8] sm:$0xff]
    %v17 = vld [vmem:[%s0 + $0x10] sm:$0xff]
    %v18 = vld [vmem:[%s0 + $0x18] sm:$0xff]
    %v19 = vld [vmem:[%s1] sm:$0xff]
    %v20 = vld [vmem:[%s1 + $0x8] sm:$0xff]
    %v21 = vld [vmem:[%s1 + $0x10] sm:$0xff]
    %v22 = vld [vmem:[%s1 + $0x18] sm:$0xff]
    %v23 = vld [vmem:[%s1 + $0x20] sm:$0xff]
    %v24 = vld [vmem:[%s1 + $0x28] sm:$0xff]
    %v25 = vld [vmem:[%s1 + $0x30] sm:$0xff]
    %v26 = vld [vmem:[%s1 + $0x38] sm:$0xff]
    %v27 = vld [vmem:[%s1 + $0x40] sm:$0xff]
    %v28 = vld [vmem:[%s1 + $0x48] sm:$0xff]
    %v29 = vld [vmem:[%s1 + $0x50] sm:$0xff]
    %v30 = vld [vmem:[%s1 + $0x58] sm:$0xff]
    %v31 = vld [vmem:[%s1 + $0x60] sm:$0xff]
    %v32 = vld [vmem:[%s1 + $0x68] sm:$0xff]
    %v33 = vld [vmem:[%s1 + $0x70] sm:$0xff]
    %v34 = vld [vmem:[%s1 + $0x78] sm:$0xff]
    %v35 = vld [vmem:[%s1 + $0x80] sm:$0xff]
    %v36 = vld [vmem:[%s1 + $0x88] sm:$0xff]
    %v37 = vld [vmem:[%s1 + $0x90] sm:$0xff]
    %v38 = vld [vmem:[%s1 + $0x98] sm:$0xff]
    %v39 = vld [vmem:[%s1 + $0xa0] sm:$0xff]
    %v40 = vld [vmem:[%s1 + $0xa8] sm:$0xff]
    %v41 = vld [vmem:[%s1 + $0xb0] sm:$0xff]
    %v42 = vld [vmem:[%s1 + $0xb8] sm:$0xff]
    %v43 = vld [vmem:[%s1 + $0xc0] sm:$0xff]
    %v44 = vld [vmem:[%s1 + $0xc8] sm:$0xff]
    %v45 = vld [vmem:[%s1 + $0xd0] sm:$0xff]
    %v46 = vld [vmem:[%s1 + $0xd8] sm:$0xff]
    %v47 = vld [vmem:[%s1 + $0xe0] sm:$0xff]
    %v48 = vld [vmem:[%s1 + $0xe8] sm:$0xff]
    %v49 = vld [vmem:[%s1 + $0xf0] sm:$0xff]
    %v50 = vld [vmem:[%s1 + $0xf8] sm:$0xff]
    %v51 = vld [vmem:[%s2] sm:$0x3]
    %v53 = vlaneseq
    %v54 = vshrl.u32 %v53, 7
    %v55 = vsub.s32 0, %v54
    %v56 = vrot.slane %v51, %v55
    %v57 = vlaneseq
    %v58 = vshrl.u32 %v57, 7
    %v59 = vsub.s32 1, %v58
    %v60 = vrot.slane %v51, %v59
    %v67 = vunpack.c.l.b16 %v15
    %v68 = vunpack.c.h.b16 %v15
    %v69 = vunpack.c.l.b16 %v16
    %v70 = vunpack.c.h.b16 %v16
    %v71 = vunpack.c.l.b16 %v17
    %v72 = vunpack.c.h.b16 %v17
    %v73 = vunpack.c.l.b16 %v18
    %v74 = vunpack.c.h.b16 %v18
    %v75 = vpack.c.b16 %v69, %v67
    %v76 = vpack.c.b16 %v70, %v68
    %v77 = vpack.c.b16 %v73, %v71
    %v78 = vpack.c.b16 %v74, %v72
    %v115 = vunpack.c.l.b16 %v19
    %v116 = vunpack.c.h.b16 %v19
    %v117 = vunpack.c.l.b16 %v20
    %v118 = vunpack.c.h.b16 %v20
    %v119 = vunpack.c.l.b16 %v21
    %v120 = vunpack.c.h.b16 %v21
    %v121 = vunpack.c.l.b16 %v22
    %v122 = vunpack.c.h.b16 %v22
    %v123 = vunpack.c.l.b16 %v23
    %v124 = vunpack.c.h.b16 %v23
    %v125 = vunpack.c.l.b16 %v24
    %v126 = vunpack.c.h.b16 %v24
    %v127 = vunpack.c.l.b16 %v25
    %v128 = vunpack.c.h.b16 %v25
    %v129 = vunpack.c.l.b16 %v26
    %v130 = vunpack.c.h.b16 %v26
    %v131 = vunpack.c.l.b16 %v27
    %v132 = vunpack.c.h.b16 %v27
    %v133 = vunpack.c.l.b16 %v28
    %v134 = vunpack.c.h.b16 %v28
    %v135 = vunpack.c.l.b16 %v29
    %v136 = vunpack.c.h.b16 %v29
    %v137 = vunpack.c.l.b16 %v30
    %v138 = vunpack.c.h.b16 %v30
    %v139 = vunpack.c.l.b16 %v31
    %v140 = vunpack.c.h.b16 %v31
    %v141 = vunpack.c.l.b16 %v32
    %v142 = vunpack.c.h.b16 %v32
    %v143 = vunpack.c.l.b16 %v33
    %v144 = vunpack.c.h.b16 %v33
    %v145 = vunpack.c.l.b16 %v34
    %v146 = vunpack.c.h.b16 %v34
    %v147 = vunpack.c.l.b16 %v35
    %v148 = vunpack.c.h.b16 %v35
    %v149 = vunpack.c.l.b16 %v36
    %v150 = vunpack.c.h.b16 %v36
    %v151 = vunpack.c.l.b16 %v37
    %v152 = vunpack.c.h.b16 %v37
    %v153 = vunpack.c.l.b16 %v38
    %v154 = vunpack.c.h.b16 %v38
    %v155 = vunpack.c.l.b16 %v39
    %v156 = vunpack.c.h.b16 %v39
    %v157 = vunpack.c.l.b16 %v40
    %v158 = vunpack.c.h.b16 %v40
    %v159 = vunpack.c.l.b16 %v41
    %v160 = vunpack.c.h.b16 %v41
    %v161 = vunpack.c.l.b16 %v42
    %v162 = vunpack.c.h.b16 %v42
    %v163 = vunpack.c.l.b16 %v43
    %v164 = vunpack.c.h.b16 %v43
    %v165 = vunpack.c.l.b16 %v44
    %v166 = vunpack.c.h.b16 %v44
    %v167 = vunpack.c.l.b16 %v45
    %v168 = vunpack.c.h.b16 %v45
    %v169 = vunpack.c.l.b16 %v46
    %v170 = vunpack.c.h.b16 %v46
    %v171 = vunpack.c.l.b16 %v47
    %v172 = vunpack.c.h.b16 %v47
    %v173 = vunpack.c.l.b16 %v48
    %v174 = vunpack.c.h.b16 %v48
    %v175 = vunpack.c.l.b16 %v49
    %v176 = vunpack.c.h.b16 %v49
    %v177 = vunpack.c.l.b16 %v50
    %v178 = vunpack.c.h.b16 %v50
    %v179 = vpack.c.b16 %v117, %v115
    %v180 = vpack.c.b16 %v118, %v116
    %v181 = vpack.c.b16 %v121, %v119
    %v182 = vpack.c.b16 %v122, %v120
    %v183 = vpack.c.b16 %v125, %v123
    %v184 = vpack.c.b16 %v126, %v124
    %v185 = vpack.c.b16 %v129, %v127
    %v186 = vpack.c.b16 %v130, %v128
    %v187 = vpack.c.b16 %v133, %v131
    %v188 = vpack.c.b16 %v134, %v132
    %v189 = vpack.c.b16 %v137, %v135
    %v190 = vpack.c.b16 %v138, %v136
    %v191 = vpack.c.b16 %v141, %v139
    %v192 = vpack.c.b16 %v142, %v140
    %v193 = vpack.c.b16 %v145, %v143
    %v194 = vpack.c.b16 %v146, %v144
    %v195 = vpack.c.b16 %v149, %v147
    %v196 = vpack.c.b16 %v150, %v148
    %v197 = vpack.c.b16 %v153, %v151
    %v198 = vpack.c.b16 %v154, %v152
    %v199 = vpack.c.b16 %v157, %v155
    %v200 = vpack.c.b16 %v158, %v156
    %v201 = vpack.c.b16 %v161, %v159
    %v202 = vpack.c.b16 %v162, %v160
    %v203 = vpack.c.b16 %v165, %v163
    %v204 = vpack.c.b16 %v166, %v164
    %v205 = vpack.c.b16 %v169, %v167
    %v206 = vpack.c.b16 %v170, %v168
    %v207 = vpack.c.b16 %v173, %v171
    %v208 = vpack.c.b16 %v174, %v172
    %v209 = vpack.c.b16 %v177, %v175
    %v210 = vpack.c.b16 %v178, %v176
    %243 = vmatprep.subr.bf16.mxu0 %v180
    %244 = vmatpush1.bf16.msra.mxu0 %v179
    %245 = vmatprep.subr.bf16.mxu0 %v182
    %246 = vmatpush1.bf16.msra.mxu0 %v181
    %247 = vmatprep.subr.bf16.mxu0 %v184
    %248 = vmatpush1.bf16.msra.mxu0 %v183
    %249 = vmatprep.subr.bf16.mxu0 %v186
    %250 = vmatpush1.bf16.msra.mxu0 %v185
    %251 = vmatprep.subr.bf16.mxu0 %v188
    %252 = vmatpush1.bf16.msra.mxu0 %v187
    %253 = vmatprep.subr.bf16.mxu0 %v190
    %254 = vmatpush1.bf16.msra.mxu0 %v189
    %255 = vmatprep.subr.bf16.mxu0 %v192
    %256 = vmatpush1.bf16.msra.mxu0 %v191
    %257 = vmatprep.subr.bf16.mxu0 %v194
    %258 = vmatpush1.bf16.msra.mxu0 %v193
    %259 = vmatprep.subr.bf16.mxu0 %v196
    %260 = vmatpush1.bf16.msra.mxu0 %v195
    %261 = vmatprep.subr.bf16.mxu0 %v198
    %262 = vmatpush1.bf16.msra.mxu0 %v197
    %263 = vmatprep.subr.bf16.mxu0 %v200
    %264 = vmatpush1.bf16.msra.mxu0 %v199
    %265 = vmatprep.subr.bf16.mxu0 %v202
    %266 = vmatpush1.bf16.msra.mxu0 %v201
    %267 = vmatprep.subr.bf16.mxu0 %v204
    %268 = vmatpush1.bf16.msra.mxu0 %v203
    %269 = vmatprep.subr.bf16.mxu0 %v206
    %270 = vmatpush1.bf16.msra.mxu0 %v205
    %271 = vmatprep.subr.bf16.mxu0 %v208
    %272 = vmatpush1.bf16.msra.mxu0 %v207
    %273 = vmatprep.subr.bf16.mxu0 %v210
    %274 = vmatpush1.bf16.msra.mxu0 %v209
    %275 = vmatprep.mubr.bf16.mxu0 %v76
    %276 = vmatmul.mubr.bf16.gmra.mrb[0].mxu0 %v75
    %v277 = vpop.f32.mrb[0].mxu0
    %v278 = vadd.f32 %v56, %v277
    %v279 = vpop.f32.mrb[0].mxu0
    %v280 = vadd.f32 %v60, %v279
    %v281 = vpop.f32.mrb[0].mxu0
    %v282 = vadd.f32 %v56, %v281
    %v283 = vpop.f32.mrb[0].mxu0
    %v284 = vadd.f32 %v60, %v283
    %285 = vmatprep.mubr.bf16.mxu0 %v78
    %286 = vmatmul.mubr.bf16.gmra.mrb[0].mxu0 %v77
    %v287 = vpop.f32.mrb[0].mxu0
    %v288 = vadd.f32 %v56, %v287
    %v289 = vpop.f32.mrb[0].mxu0
    %v290 = vadd.f32 %v60, %v289
    %v291 = vpop.f32.mrb[0].mxu0
    %v292 = vadd.f32 %v56, %v291
    %v293 = vpop.f32.mrb[0].mxu0
    %v294 = vadd.f32 %v60, %v293
    %295 = vdwg.mxu0
    %v296 = vpack.c.bf16 %v282, %v278
    %v297 = vpack.c.bf16 %v284, %v280
    %v298 = vpack.c.bf16 %v292, %v288
    %v299 = vpack.c.bf16 %v294, %v290
    %v304 = vunpack.c.l.b16 %v296
    %v305 = vunpack.c.l.b16 %v297
    %v306 = vunpack.c.h.b16 %v296
    %v307 = vunpack.c.h.b16 %v297
    %v308 = vunpack.c.l.b16 %v298
    %v309 = vunpack.c.l.b16 %v299
    %v310 = vunpack.c.h.b16 %v298
    %v311 = vunpack.c.h.b16 %v299
    %v312 = vpack.c.b16 %v305, %v304
    %v313 = vpack.c.b16 %v307, %v306
    %v314 = vpack.c.b16 %v309, %v308
    %v315 = vpack.c.b16 %v311, %v310
    %vm320 = vcmask 1043456
    %vm321 = vcmask 523268
    %vm322 = vmor %vm321, %vm320
    %323 = vst.msk [vmem:[#allocation2] sm:$0xff] %vm322, %v312
    %324 = vst.msk [vmem:[#allocation2 + $0x8] sm:$0xff] %vm322, %v313
    %325 = vst.msk [vmem:[#allocation2 + $0x10] sm:$0xff] %vm322, %v314
    %326 = vst.msk [vmem:[#allocation2 + $0x18] sm:$0xff] %vm322, %v315
    // Predicated region
    $region14: #{tpu_custom_call.1} parent=1 // pred_check
      _
    $region15: #{tpu_custom_call.1} parent=1 // pred_check_branch
      %328 = sbr.rel (0) target = $region17
    $region16: #{tpu_custom_call.1} parent=1 // pred_region
      %s330 = ssub.s32 512, 512
      %331 = vsyncadd [#allocation3], %s330
      %s332 = sshll.u32 [#allocation2], 4
      %s333 = int_to_ptr.vmem [resolvable:$true] %s332
      %338 = dma.vmem_to_hbm [thread:$0]  %s333, 512, %s3, [#allocation3], 128, 128, 8
    $region17: #{tpu_custom_call.1} parent=1 // pred_fallthru
      _
    // Predicated region
    $region18: #{tpu_custom_call.1} parent=1 // pred_check
      _
    $region19: #{tpu_custom_call.1} parent=1 // pred_check_branch
      %340 = sbr.rel (0) target = $region21
    $region20: #{tpu_custom_call.1} parent=1 // pred_region
      %341 = dma.done [#allocation3], 512
    $region21: #{tpu_custom_call.1} parent=1 // pred_fallthru
      _
    %342 = vsyncpa [#allocation3], 1

</llo_original>
